<compile_context>
chip_gen: v5e
topology: v5e:2x2
jax: 0.10.0
libtpu: 0.0.40
codegen_flags: <defaults>
</compile_context>

<pallas_src>
import functools

import jax
import jax.numpy as jnp
from jax.experimental import pallas as pl
from jax.experimental.pallas import tpu as pltpu


def se_kernel(x_ref, wsq_t_ref, wex_t_ref, o_ref, *, inv_hw):
    # x_ref / o_ref: (B_TILE, HW, C); wsq_t_ref: (C, Cr); wex_t_ref: (Cr, C)
    x = x_ref[...]                                              # activation dtype

    # Squeeze: global average pool over HW (sublane axis), f32 accumulation,
    # without materializing a full f32 copy of the slab.
    pooled = jnp.sum(x, axis=1, dtype=jnp.float32) * inv_hw     # (B, C) f32

    # 1x1 conv C -> Cr (matmul with channels on lanes), ReLU.
    s = jnp.dot(pooled, wsq_t_ref[...].astype(jnp.float32),
                preferred_element_type=jnp.float32)             # (B, Cr)
    s = jnp.maximum(s, 0.0)

    # 1x1 conv Cr -> C, sigmoid (exp/recip go to the EUP slot -> ~free here).
    e = jnp.dot(s, wex_t_ref[...].astype(jnp.float32),
                preferred_element_type=jnp.float32)             # (B, C)
    scale = jax.nn.sigmoid(e)                                   # (B, C) f32

    # Recalibrate: per-channel scale splat over the HW (sublane) axis,
    # multiply in the activation dtype (lane-dense store).
    o_ref[...] = x * scale[:, None, :].astype(x.dtype)


def _choose_batch_tile(n, c, hw, itemsize, block_budget_bytes=4 * 1024 * 1024):
    """Largest divisor of n whose (b, HW, C) block fits the per-buffer budget.

    With double-buffered in+out, ~4x the block is resident, so a 4 MiB block
    stays comfortably under the explicit 48 MiB limit set below (v7x has only
    64 MiB physical VMEM).  Keep at least 2 grid steps so ("parallel",) can
    shard across the 2 TensorCores on v7x.
    """
    per_sample = c * hw * itemsize
    max_b = max(1, block_budget_bytes // max(per_sample, 1))
    max_b = min(max_b, max(1, n // 2))
    b = int(min(n, max_b))
    while n % b != 0:
        b -= 1
    return b


def squeeze_excitation(x, w_sq, w_ex):
    """SE forward pass.  x: (N, C, H, W); w_sq: (Cr, C); w_ex: (C, Cr)."""
    N, C, H, W = x.shape
    Cr = w_sq.shape[0]
    HW = H * W
    itemsize = jnp.dtype(x.dtype).itemsize

    # Channels-last presentation (pure layout plumbing; in an NHWC pipeline
    # these transposes disappear).
    x_nhwc = jnp.transpose(x, (0, 2, 3, 1)).reshape(N, HW, C)
    wsq_t = jnp.transpose(w_sq)   # (C, Cr)
    wex_t = jnp.transpose(w_ex)   # (Cr, C)

    b_tile = _choose_batch_tile(N, C, HW, itemsize)
    grid = (N // b_tile,)

    kernel = functools.partial(se_kernel, inv_hw=1.0 / HW)

    cost = pl.CostEstimate(
        flops=2 * N * C * HW + 4 * N * C * Cr,
        transcendentals=N * C,
        bytes_accessed=2 * N * C * HW * itemsize
        + 2 * C * Cr * jnp.dtype(w_sq.dtype).itemsize,
    )

    out_nhwc = pl.pallas_call(
        kernel,
        out_shape=jax.ShapeDtypeStruct((N, HW, C), x.dtype),
        grid_spec=pltpu.PrefetchScalarGridSpec(
            num_scalar_prefetch=0,
            grid=grid,
            in_specs=[
                pl.BlockSpec((b_tile, HW, C), lambda n: (n, 0, 0)),
                pl.BlockSpec((C, Cr), lambda n: (0, 0)),   # constant block idx:
                pl.BlockSpec((Cr, C), lambda n: (0, 0)),   # no re-DMA across grid
            ],
            out_specs=pl.BlockSpec((b_tile, HW, C), lambda n: (n, 0, 0)),
        ),
        compiler_params=pltpu.CompilerParams(
            dimension_semantics=("parallel",),
            vmem_limit_bytes=48 * 1024 * 1024,
        ),
        cost_estimate=cost,
    )(x_nhwc, wsq_t, wex_t)

    return jnp.transpose(out_nhwc.reshape(N, H, W, C), (0, 3, 1, 2))


def squeeze_excitation_ref(x, w_sq, w_ex):
    """Pure-JAX reference matching the PyTorch forward (NCHW)."""
    pooled = jnp.mean(x, axis=(2, 3), keepdims=True)            # (N, C, 1, 1)
    s = jnp.einsum("rc,ncij->nrij", w_sq, pooled)               # (N, Cr, 1, 1)
    s = jnp.maximum(s, 0.0)
    e = jnp.einsum("cr,nrij->ncij", w_ex, s)                    # (N, C, 1, 1)
    return x * jax.nn.sigmoid(e)


if __name__ == "__main__":
    # Small shapes consistent with the module: N=2, C=16, reduction=4, 8x8.
    N, C, H, W = 2, 16, 8, 8
    reduction_factor = 4
    Cr = C // reduction_factor

    key = jax.random.PRNGKey(0)
    kx, k1, k2 = jax.random.split(key, 3)

    x = jax.random.normal(kx, (N, C, H, W), dtype=jnp.float32)
    # Conv2d(C -> Cr, k=1, bias=False) weight squeezed to (Cr, C); excitation (C, Cr).
    w_sq = jax.random.normal(k1, (Cr, C), dtype=jnp.float32) * 0.1
    w_ex = jax.random.normal(k2, (C, Cr), dtype=jnp.float32) * 0.1

    out = squeeze_excitation(x, w_sq, w_ex)
    out = jax.block_until_ready(out)

    ref = squeeze_excitation_ref(x, w_sq, w_ex)
    assert out.shape == (N, C, H, W)
    assert jnp.allclose(out, ref, atol=1e-5, rtol=1e-5), "mismatch vs reference"

    print("KERNEL_OK")
</pallas_src>

<mosaic_0001>
module attributes {stable_mosaic.version = 11 : i64} {
  func.func @se_kernel(%arg0: i32, %arg1: memref<1x64x16xf32, #tpu.memory_space<vmem>>, %arg2: memref<16x4xf32, #tpu.memory_space<vmem>>, %arg3: memref<4x16xf32, #tpu.memory_space<vmem>>, %arg4: memref<1x64x16xf32, #tpu.memory_space<vmem>>) attributes {dimension_semantics = [#tpu.dimension_semantics<parallel>], iteration_bounds = array<i64: 2>, scalar_prefetch = 0 : i64, scratch_operands = 0 : i64, tpu.core_type = #tpu.core_type<tc>, window_params = [{transform_indices = @transform_0, window_bounds = array<i64: 1, 64, 16>}, {pipeline_mode = #tpu.pipeline_mode<synchronous>, transform_indices = @transform_1, window_bounds = array<i64: 16, 4>}, {pipeline_mode = #tpu.pipeline_mode<synchronous>, transform_indices = @transform_2, window_bounds = array<i64: 4, 16>}, {transform_indices = @transform_3, window_bounds = array<i64: 1, 64, 16>}]} {
    %c0 = arith.constant 0 : index
    %c0_0 = arith.constant 0 : index
    %c0_1 = arith.constant 0 : index
    %0 = vector.load %arg1[%c0, %c0_0, %c0_1] : memref<1x64x16xf32, #tpu.memory_space<vmem>>, vector<1x64x16xf32>
    %cst = arith.constant dense<0.000000e+00> : vector<1x16xf32>
    %1 = vector.multi_reduction <add>, %0, %cst [1] : vector<1x64x16xf32> to vector<1x16xf32>
    %cst_2 = arith.constant 1.562500e-02 : f32
    %2 = vector.broadcast %cst_2 : f32 to vector<1x16xf32>
    %3 = arith.mulf %1, %2 : vector<1x16xf32>
    %c0_3 = arith.constant 0 : index
    %c0_4 = arith.constant 0 : index
    %4 = vector.load %arg2[%c0_3, %c0_4] : memref<16x4xf32, #tpu.memory_space<vmem>>, vector<16x4xf32>
    %cst_5 = arith.constant dense<0.000000e+00> : vector<1x4xf32>
    %5 = tpu.matmul %3, %4, %cst_5 {dimension_numbers = #tpu.dot_dimension_numbers<[1], [0], [0], [1], [0, 0, 1, 1], [], []>} : vector<1x16xf32>, vector<16x4xf32>, vector<1x4xf32> -> vector<1x4xf32>
    %cst_6 = arith.constant 0.000000e+00 : f32
    %6 = vector.broadcast %cst_6 : f32 to vector<1x4xf32>
    %7 = arith.maximumf %5, %6 : vector<1x4xf32>
    %c0_7 = arith.constant 0 : index
    %c0_8 = arith.constant 0 : index
    %8 = vector.load %arg3[%c0_7, %c0_8] : memref<4x16xf32, #tpu.memory_space<vmem>>, vector<4x16xf32>
    %cst_9 = arith.constant dense<0.000000e+00> : vector<1x16xf32>
    %9 = tpu.matmul %7, %8, %cst_9 {dimension_numbers = #tpu.dot_dimension_numbers<[1], [0], [0], [1], [0, 0, 1, 1], [], []>} : vector<1x4xf32>, vector<4x16xf32>, vector<1x16xf32> -> vector<1x16xf32>
    %10 = arith.negf %9 : vector<1x16xf32>
    %11 = math.exp %10 : vector<1x16xf32>
    %cst_10 = arith.constant 1.000000e+00 : f32
    %12 = vector.broadcast %cst_10 : f32 to vector<1x16xf32>
    %13 = arith.addf %12, %11 : vector<1x16xf32>
    %14 = arith.divf %12, %13 : vector<1x16xf32>
    %15 = vector.shape_cast %14 : vector<1x16xf32> to vector<1x1x16xf32>
    %16 = vector.broadcast %15 : vector<1x1x16xf32> to vector<1x64x16xf32>
    %17 = arith.mulf %0, %16 : vector<1x64x16xf32>
    %c0_11 = arith.constant 0 : index
    %c0_12 = arith.constant 0 : index
    %c0_13 = arith.constant 0 : index
    %18 = vector.load %arg4[%c0_11, %c0_12, %c0_13] : memref<1x64x16xf32, #tpu.memory_space<vmem>>, vector<1x64x16xf32>
    tpu.vector_store %arg4[%c0_11, %c0_12, %c0_13], %17 {strides = array<i32>} : memref<1x64x16xf32, #tpu.memory_space<vmem>>, vector<1x64x16xf32>,
    return
  }
  func.func @transform_0(%arg0: i32) -> (i32, i32, i32) {
    %c0_i32 = arith.constant 0 : i32
    %c0_i32_0 = arith.constant 0 : i32
    %c0_i32_1 = arith.constant 0 : i32
    return %arg0, %c0_i32, %c0_i32_0 : i32, i32, i32
  }
  func.func @transform_1(%arg0: i32) -> (i32, i32) {
    %c0_i32 = arith.constant 0 : i32
    %c0_i32_0 = arith.constant 0 : i32
    %c0_i32_1 = arith.constant 0 : i32
    return %c0_i32, %c0_i32_0 : i32, i32
  }
  func.func @transform_2(%arg0: i32) -> (i32, i32) {
    %c0_i32 = arith.constant 0 : i32
    %c0_i32_0 = arith.constant 0 : i32
    %c0_i32_1 = arith.constant 0 : i32
    return %c0_i32, %c0_i32_0 : i32, i32
  }
  func.func @transform_3(%arg0: i32) -> (i32, i32, i32) {
    %c0_i32 = arith.constant 0 : i32
    %c0_i32_0 = arith.constant 0 : i32
    %c0_i32_1 = arith.constant 0 : i32
    return %arg0, %c0_i32, %c0_i32_0 : i32, i32, i32
  }
}

</mosaic_0001>

<llo_original>
// kernel: tpu_custom_call.1
$region0: #{tpu_custom_call.1}
  #allocation0 [shape = 'u32[]', space=smem, size = 0x4, offset = 0x4, fixed_abs, tag = 'smem constant byte address 0x4 - core index']
  #allocation1 [shape = 'u32[72,128]{1,0:T(1,128)}', space=vmem, size = 0x9000, scoped, tag = 'internal scratch']
  %s0 = inlined_call_operand.vmem [shape: f32[2,64,16], index: 0, kind: input, shape index: {}]
  %s1 = inlined_call_operand.vmem [shape: f32[16,4], index: 1, kind: input, shape index: {}]
  %s2 = inlined_call_operand.vmem [shape: f32[4,16], index: 2, kind: input, shape index: {}]
  %s3 = inlined_call_operand.vmem [shape: f32[2,64,16], index: 3, kind: output, shape index: {}]
  %s4 = sld [smem:[#allocation0]]
  $region45: #{tpu_custom_call.1} parent=0
    _
  %s6 = ssub.s32 1, %s4
  %s7 = scalar_select 0, %s6, %s4
  loop: start=0, step=1, limit=4
  $region2: #{tpu_custom_call.1} parent=0 // loop_pre_header
    _
  $region3: #{tpu_custom_call.1} parent=0 // loop_header
    %s9 = sphi 0, %s13
    %p10 = scmp.ge.s32.totalorder %s9, 4
    %s19 = sphi 0, %s21
    %s22 = sphi 0, %s19
    %s23 = sphi 0, %s22
    %s39 = sphi 0, %s23
    %s43 = sphi 0, %s43
    %s45 = sphi 0, %s43
    %s46 = sphi 0, %s45
    %s60 = sphi 0, %s46
    %s64 = sphi 0, %s64
    %s66 = sphi 0, %s64
    %s67 = sphi 0, %s66
    %s81 = sphi 0, %s67
    %s87 = sphi 0, %s89
    %s90 = sphi 0, %s87
    %s91 = sphi 0, %s90
    %s107 = sphi 0, %s91
  $region4: #{tpu_custom_call.1} parent=0 // loop_header_branch
    %12 = sbr.rel (%p10) target = $region8
  $region5: #{tpu_custom_call.1} parent=0 // loop_body
    %s14 = ssub.s32 %s9, 1
    %s15 = ssub.s32 %s9, 2
    %s16 = sadd.s32 %s9, 1
    %s17 = ssub.s32 %s9, %s16
    %p18 = scmp.eq.s32.totalorder %s17, 0
    %s20 = sadd.s32 %s19, 1
    %s21 = scalar_select %p18, %s19, %s20
    %p24 = pneg %p18
    %p25 = scmp.eq.s32.totalorder %s9, 1
    %p26 = por %p24, %p25
    %p27 = scmp.ne.s32.totalorder %s19, %s22
    %p28 = scmp.eq.s32.totalorder %s9, 0
    %p29 = por %p27, %p28
    %p30 = scmp.ne.s32.totalorder %s19, %s22
    %p31 = scmp.eq.s32.totalorder %s14, 1
    %p32 = por %p30, %p31
    %p33 = scmp.ne.s32.totalorder %s22, %s23
    %p34 = scmp.eq.s32.totalorder %s14, 0
    %p35 = por %p33, %p34
    %p36 = scmp.ne.s32.totalorder %s22, %s23
    %p37 = scmp.eq.s32.totalorder %s15, 1
    %p38 = por %p36, %p37
    %p40 = scmp.ne.s32.totalorder %s23, %s39
    %p41 = scmp.eq.s32.totalorder %s15, 0
    %p42 = por %p40, %p41
    %s44 = sadd.s32 %s43, 1
    %p47 = scmp.eq.s32.totalorder %s9, 1
    %p48 = scmp.ne.s32.totalorder %s43, %s45
    %p49 = scmp.eq.s32.totalorder %s9, 0
    %p50 = por %p48, %p49
    %p51 = scmp.ne.s32.totalorder %s43, %s45
    %p52 = scmp.eq.s32.totalorder %s14, 1
    %p53 = por %p51, %p52
    %p54 = scmp.ne.s32.totalorder %s45, %s46
    %p55 = scmp.eq.s32.totalorder %s14, 0
    %p56 = por %p54, %p55
    %p57 = scmp.ne.s32.totalorder %s45, %s46
    %p58 = scmp.eq.s32.totalorder %s15, 1
    %p59 = por %p57, %p58
    %p61 = scmp.ne.s32.totalorder %s46, %s60
    %p62 = scmp.eq.s32.totalorder %s15, 0
    %p63 = por %p61, %p62
    %s65 = sadd.s32 %s64, 1
    %p68 = scmp.eq.s32.totalorder %s9, 1
    %p69 = scmp.ne.s32.totalorder %s64, %s66
    %p70 = scmp.eq.s32.totalorder %s9, 0
    %p71 = por %p69, %p70
    %p72 = scmp.ne.s32.totalorder %s64, %s66
    %p73 = scmp.eq.s32.totalorder %s14, 1
    %p74 = por %p72, %p73
    %p75 = scmp.ne.s32.totalorder %s66, %s67
    %p76 = scmp.eq.s32.totalorder %s14, 0
    %p77 = por %p75, %p76
    %p78 = scmp.ne.s32.totalorder %s66, %s67
    %p79 = scmp.eq.s32.totalorder %s15, 1
    %p80 = por %p78, %p79
    %p82 = scmp.ne.s32.totalorder %s67, %s81
    %p83 = scmp.eq.s32.totalorder %s15, 0
    %p84 = por %p82, %p83
    %s85 = ssub.s32 %s9, %s16
    %p86 = scmp.eq.s32.totalorder %s85, 0
    %s88 = sadd.s32 %s87, 1
    %s89 = scalar_select %p86, %s87, %s88
    %p92 = pneg %p86
    %p93 = scmp.eq.s32.totalorder %s9, 1
    %p94 = por %p92, %p93
    %p95 = scmp.ne.s32.totalorder %s87, %s90
    %p96 = scmp.eq.s32.totalorder %s9, 0
    %p97 = por %p95, %p96
    %p98 = scmp.ne.s32.totalorder %s87, %s90
    %p99 = scmp.eq.s32.totalorder %s14, 1
    %p100 = por %p98, %p99
    %p101 = scmp.ne.s32.totalorder %s90, %s91
    %p102 = scmp.eq.s32.totalorder %s14, 0
    %p103 = por %p101, %p102
    %p104 = scmp.ne.s32.totalorder %s90, %s91
    %p105 = scmp.eq.s32.totalorder %s15, 1
    %p106 = por %p104, %p105
    %p108 = scmp.ne.s32.totalorder %s91, %s107
    %p109 = scmp.eq.s32.totalorder %s15, 0
    %p110 = por %p108, %p109
    %p111 = scmp.le.s32.totalorder 1, %s9
    %p112 = scmp.lt.s32.totalorder %s9, 3
    %p113 = pnand %p111, %p112
    %p114 = pneg %p113
    // Predicated region
    $region9: #{tpu_custom_call.1} parent=5 // pred_check
      _
    $region10: #{tpu_custom_call.1} parent=5 // pred_check_branch
      %116 = sbr.rel (%p113) target = $region12
    $region11: #{tpu_custom_call.1} parent=5 // pred_region
      %s117 = ssub.s32 %s9, 1
      // Predicated region
      $region13: #{tpu_custom_call.1} parent=11 // pred_check
        %p118 = pneg %p56
      $region14: #{tpu_custom_call.1} parent=11 // pred_check_branch
        %120 = sbr.rel (%p118) target = $region16
      $region15: #{tpu_custom_call.1} parent=11 // pred_region
        _
      $region16: #{tpu_custom_call.1} parent=11 // pred_fallthru
        _
      // Predicated region
      $region17: #{tpu_custom_call.1} parent=11 // pred_check
        %p121 = pneg %p77
      $region18: #{tpu_custom_call.1} parent=11 // pred_check_branch
        %123 = sbr.rel (%p121) target = $region20
      $region19: #{tpu_custom_call.1} parent=11 // pred_region
        _
      $region20: #{tpu_custom_call.1} parent=11 // pred_fallthru
        _
    $region12: #{tpu_custom_call.1} parent=5 // pred_fallthru
      _
    %p124 = scmp.lt.s32.totalorder %s9, 2
    // Predicated region
    $region21: #{tpu_custom_call.1} parent=5 // pred_check
      %p125 = pneg %p124
    $region22: #{tpu_custom_call.1} parent=5 // pred_check_branch
      %127 = sbr.rel (%p125) target = $region24
    $region23: #{tpu_custom_call.1} parent=5 // pred_region
      // Predicated region
      $region25: #{tpu_custom_call.1} parent=23 // pred_check
        %p128 = pneg %p29
      $region26: #{tpu_custom_call.1} parent=23 // pred_check_branch
        %130 = sbr.rel (%p128) target = $region28
      $region27: #{tpu_custom_call.1} parent=23 // pred_region
        %p131 = scmp.lt.s32.totalorder %s9, 1
        %s132 = scalar_select %p131, %s9, 1
        %s133 = smul.addr %s132, 8
        %s134 = smul.addr %s133, 8
        %s135 = scalar_lea.vmem %s0, %s134
      $region28: #{tpu_custom_call.1} parent=23 // pred_fallthru
        _
    $region24: #{tpu_custom_call.1} parent=5 // pred_fallthru
      _
    %p136 = scmp.le.s32.totalorder 1, %s9
    %p137 = scmp.lt.s32.totalorder %s9, 3
    %p138 = pnand %p136, %p137
    %p139 = pneg %p138
    // Predicated region
    $region29: #{tpu_custom_call.1} parent=5 // pred_check
      _
    $region30: #{tpu_custom_call.1} parent=5 // pred_check_branch
      %141 = sbr.rel (%p138) target = $region32
    $region31: #{tpu_custom_call.1} parent=5 // pred_region
      %s142 = ssub.s32 %s9, 1
      %p143 = scmp.lt.s32.totalorder %s14, 1
      %s144 = scalar_select %p143, %s14, 1
      %s145 = smul.addr %s144, 8
      %s146 = smul.addr %s145, 8
      %s147 = scalar_lea.vmem %s0, %s146
      %p148 = pneg %p35
      %p149 = pneg %p32
      %p150 = pneg %p56
      %p151 = pneg %p53
      %p152 = pneg %p77
      %p153 = pneg %p74
      %p154 = pneg %p103
      %p155 = pneg %p100
      %p156 = scmp.lt.s32.totalorder %s14, 1
      %s157 = scalar_select %p156, %s14, 1
      %s158 = smul.addr %s157, 8
      %s159 = smul.addr %s158, 8
      %s160 = scalar_lea.vmem %s3, %s159
      %p161 = scmp.lt.s32.totalorder %s14, 1
      %s162 = scalar_select %p161, %s14, 1
      %s163 = smul.addr %s162, 8
      %s164 = smul.addr %s163, 8
      %s165 = scalar_lea.vmem %s0, %s164
      %p166 = scmp.lt.s32.totalorder %s14, 1
      %s167 = scalar_select %p166, %s14, 1
      %s168 = smul.addr %s167, 8
      %s169 = smul.addr %s168, 8
      %s170 = scalar_lea.vmem %s3, %s169
      %v171 = vld [vmem:[%s165] sm:$0xff]
      %v172 = vld [vmem:[%s165 + $0x8] sm:$0xff]
      %v173 = vld [vmem:[%s165 + $0x10] sm:$0xff]
      %v174 = vld [vmem:[%s165 + $0x18] sm:$0xff]
      %v175 = vld [vmem:[%s165 + $0x20] sm:$0xff]
      %v176 = vld [vmem:[%s165 + $0x28] sm:$0xff]
      %v177 = vld [vmem:[%s165 + $0x30] sm:$0xff]
      %v178 = vld [vmem:[%s165 + $0x38] sm:$0xff]
      %vm179 = vcmask 130048
      %v180 = vsel %vm179, %v171, 0.0
      %v181 = vsel %vm179, %v172, 0.0
      %v182 = vadd.f32 %v180, %v181
      %v183 = vsel %vm179, %v173, 0.0
      %v184 = vadd.f32 %v182, %v183
      %v185 = vsel %vm179, %v174, 0.0
      %v186 = vadd.f32 %v184, %v185
      %v187 = vsel %vm179, %v175, 0.0
      %v188 = vadd.f32 %v186, %v187
      %v189 = vsel %vm179, %v176, 0.0
      %v190 = vadd.f32 %v188, %v189
      %v191 = vsel %vm179, %v177, 0.0
      %v192 = vadd.f32 %v190, %v191
      %v193 = vsel %vm179, %v178, 0.0
      %v194 = vadd.f32 %v192, %v193
      %v195 = vrot.slane %v194, 4
      %v196 = vadd.f32 %v194, %v195
      %v197 = vrot.slane %v196, 2
      %v198 = vadd.f32 %v196, %v197
      %v199 = vrot.slane %v198, 1
      %v200 = vadd.f32 %v198, %v199
      %v201 = vmul.f32 %v200, 0.015625
      %v202 = vld [vmem:[%s1] sm:$0xff]
      %v203 = vld [vmem:[%s1 + $0x8] sm:$0xff]
      %v205 = vsel %vm179, %v201, 0
      %207 = vmatpush.msra.mxu0 0.0
      %208 = vmatpush.msra.mxu0 0.0
      %209 = vmatpush.msra.mxu0 0.0
      %210 = vmatpush.msra.mxu0 0.0
      %211 = vmatpush.msra.mxu0 0.0
      %212 = vmatpush.msra.mxu0 0.0
      %213 = vmatpush.msra.mxu0 0.0
      %214 = vmatpush.msra.mxu0 0.0
      %215 = vmatpush.msra.mxu0 0.0
      %216 = vmatpush.msra.mxu0 0.0
      %217 = vmatpush.msra.mxu0 0.0
      %218 = vmatpush.msra.mxu0 0.0
      %219 = vmatpush.msra.mxu0 0.0
      %220 = vmatpush.msra.mxu0 0.0
      %221 = vmatpush.msra.mxu0 %v203
      %222 = vmatpush.msra.mxu0 %v202
      %223 = vmatmul.f32.gmra.mxu0 %v205
      %v224 = vpop.f32.mrf.mxu0
      %v225 = vadd.f32 0.0, %v224
      %226 = vdwg.mxu0
      %v227 = vmax.f32 %v225, 0.0
      %v228 = vld [vmem:[%s2] sm:$0xf]
      %vm229 = vcmask 31744
      %v231 = vsel %vm229, %v227, 0
      %vm233 = vcmask 1043456
      %v235 = vsel %vm233, %v228, 0
      %237 = vmatpush.msra.mxu0 0.0
      %238 = vmatpush.msra.mxu0 0.0
      %239 = vmatpush.msra.mxu0 0.0
      %240 = vmatpush.msra.mxu0 0.0
      %241 = vmatpush.msra.mxu0 0.0
      %242 = vmatpush.msra.mxu0 0.0
      %243 = vmatpush.msra.mxu0 0.0
      %244 = vmatpush.msra.mxu0 0.0
      %245 = vmatpush.msra.mxu0 0.0
      %246 = vmatpush.msra.mxu0 0.0
      %247 = vmatpush.msra.mxu0 0.0
      %248 = vmatpush.msra.mxu0 0.0
      %249 = vmatpush.msra.mxu0 0.0
      %250 = vmatpush.msra.mxu0 0.0
      %251 = vmatpush.msra.mxu0 0.0
      %252 = vmatpush.msra.mxu0 %v235
      %253 = vmatmul.f32.gmra.mxu0 %v231
      %v254 = vpop.f32.mrf.mxu0
      %v255 = vadd.f32 0.0, %v254
      %256 = vdwg.mxu0
      %v257 = vxor.u32 %v255, 2147483648
      %v258 = vmul.f32 %v257, 1.442695
      %v259 = vpow.pop %v258
      %v260 = vadd.f32 %v259, 1.0
      %v261 = vrcp.pop %v260
      %v262 = vmul.f32 %v260, %v261
      %v263 = vsub.f32 1.0, %v262
      %v264 = vmul.f32 %v261, %v263
      %v265 = vadd.f32 %v261, %v264
      %vm266 = vweird.f32 %v260
      %vm267 = vweird.f32 %v261
      %vm268 = vmor %vm266, %vm267
      %v269 = vsel %vm268, %v261, %v265
      %v270 = vand.u32 2147483647, %v260
      %vm271 = vcmp.eq.f32.partialorder %v270, 8.507059e+37
      %v272 = vand.u32 %v260, 2147483648
      %v273 = vor.u32 1.1754944e-38, %v272
      %v274 = vsel %vm271, %v273, %v269
      %v275 = vmul.f32 1.0, %v274
      %v276 = vperm.slane %v275, 0
      %v277 = vmul.f32 %v171, %v276
      %v278 = vmul.f32 %v172, %v276
      %v279 = vmul.f32 %v173, %v276
      %v280 = vmul.f32 %v174, %v276
      %v281 = vmul.f32 %v175, %v276
      %v282 = vmul.f32 %v176, %v276
      %v283 = vmul.f32 %v177, %v276
      %v284 = vmul.f32 %v178, %v276
      %285 = vst.msk [vmem:[%s170] sm:$0xff] %vm179, %v277
      %286 = vst.msk [vmem:[%s170 + $0x8] sm:$0xff] %vm179, %v278
      %287 = vst.msk [vmem:[%s170 + $0x10] sm:$0xff] %vm179, %v279
      %288 = vst.msk [vmem:[%s170 + $0x18] sm:$0xff] %vm179, %v280
      %289 = vst.msk [vmem:[%s170 + $0x20] sm:$0xff] %vm179, %v281
      %290 = vst.msk [vmem:[%s170 + $0x28] sm:$0xff] %vm179, %v282
      %291 = vst.msk [vmem:[%s170 + $0x30] sm:$0xff] %vm179, %v283
      %292 = vst.msk [vmem:[%s170 + $0x38] sm:$0xff] %vm179, %v284
      %p293 = scmp.lt.s32.totalorder %s14, 1
      %s294 = scalar_select %p293, %s14, 1
      %s295 = smul.addr %s294, 8
      %s296 = smul.addr %s295, 8
      %s297 = scalar_lea.vmem %s3, %s296
      // Predicated region
      $region33: #{tpu_custom_call.1} parent=31 // pred_check
        %p298 = pneg %p100
      $region34: #{tpu_custom_call.1} parent=31 // pred_check_branch
        %300 = sbr.rel (%p298) target = $region36
      $region35: #{tpu_custom_call.1} parent=31 // pred_region
        _
      $region36: #{tpu_custom_call.1} parent=31 // pred_fallthru
        _
    $region32: #{tpu_custom_call.1} parent=5 // pred_fallthru
      _
    %p301 = scmp.le.s32.totalorder 2, %s9
    // Predicated region
    $region37: #{tpu_custom_call.1} parent=5 // pred_check
      %p302 = pneg %p301
    $region38: #{tpu_custom_call.1} parent=5 // pred_check_branch
      %304 = sbr.rel (%p302) target = $region40
    $region39: #{tpu_custom_call.1} parent=5 // pred_region
      %s305 = ssub.s32 %s9, 2
      // Predicated region
      $region41: #{tpu_custom_call.1} parent=39 // pred_check
        %p306 = pneg %p106
      $region42: #{tpu_custom_call.1} parent=39 // pred_check_branch
        %308 = sbr.rel (%p306) target = $region44
      $region43: #{tpu_custom_call.1} parent=39 // pred_region
        %p309 = scmp.lt.s32.totalorder %s15, 1
        %s310 = scalar_select %p309, %s15, 1
        %s311 = smul.addr %s310, 8
        %s312 = smul.addr %s311, 8
        %s313 = scalar_lea.vmem %s3, %s312
      $region44: #{tpu_custom_call.1} parent=39 // pred_fallthru
        _
    $region40: #{tpu_custom_call.1} parent=5 // pred_fallthru
      _
  $region6: #{tpu_custom_call.1} parent=0 // loop_footer
    %s13 = sadd.s32 1, %s9
  $region7: #{tpu_custom_call.1} parent=0 // loop_footer_branch
    %8 = sbr.rel target = $region3
  $region8: #{tpu_custom_call.1} parent=0 // loop_exit
    _

</llo_original>
